<compile_context>
chip_gen: v7x
topology: tpu7x:2x2x1
jax: 0.10.0
libtpu: 0.0.40
codegen_flags: <defaults>
</compile_context>

<pallas_src>
import functools

import jax
import jax.numpy as jnp
from jax.experimental import pallas as pl
from jax.experimental.pallas import tpu as pltpu


def _mhsa_kernel(x_ref, mask_ref, w1t_ref, w2t_ref, out_ref, *, compute_dtype):
    # x_ref   : (bt, Lp, D) f32   raw activations (cast to compute dtype here)
    # mask_ref: (bt, 1, Lp) f32   0/1 validity mask (bias built in-kernel)
    # w1t_ref : (D, O)      f32   linear1.weight.T
    # w2t_ref : (O, H)      f32   linear2.weight.T
    # out_ref : (bt, H, D)  f32   attended.permute(0, 2, 1)
    f32 = jnp.float32
    cdt = compute_dtype
    exact = cdt == f32

    bt, Lp, D = x_ref.shape
    H = w2t_ref.shape[1]

    # In-kernel cast keeps the dominant HBM read of x at its source dtype
    # instead of materializing a bf16 copy of x in HBM from the wrapper.
    xc = x_ref[...].astype(cdt)                       # (bt, Lp, D)
    w1t = w1t_ref[...].astype(cdt)                    # (D, O)
    w2t = w2t_ref[...].astype(cdt)                    # (O, H)

    # ---- Hoisted matmuls over the whole bt*Lp token axis: the MXU streams
    # ---- many rows against each stationary weight (pushed once per step).
    # ---- Lp % 8 == 0 is guaranteed by the wrapper, so the reshapes below are
    # ---- layout no-ops (no relayout / data movement).
    x2 = xc.reshape(bt * Lp, D)                       # (N, D)
    tmp = jnp.tanh(jnp.dot(x2, w1t, preferred_element_type=f32))        # (N, O) f32
    logits = jnp.dot(tmp.astype(cdt), w2t, preferred_element_type=f32)  # (N, H) f32

    # One transpose per grid step -> softmax is lane-dense in L.
    logits = jnp.transpose(logits.reshape(bt, Lp, H), (0, 2, 1))        # (bt, H, Lp)

    # masked_fill(mask == 0, -inf) as an additive bias, broadcast over heads.
    bias = jnp.where(mask_ref[...] == 0,
                     jnp.float32(-jnp.inf), jnp.float32(0.0))           # (bt, 1, Lp)
    logits = logits + bias

    # Softmax over the sequence axis (lanes).  Fully-masked rows give NaN,
    # exactly like torch.softmax over an all--inf row (module precondition:
    # every row has at least one valid token).
    m = jnp.max(logits, axis=-1, keepdims=True)       # (bt, H, 1)
    e = jnp.exp(logits - m)                           # (bt, H, Lp)
    denom = jnp.sum(e, axis=-1, keepdims=True)        # (bt, H, 1)
    attn = e * pl.reciprocal(denom, approx=not exact)

    # attended^T: (bt, H, Lp) @ (bt, Lp, D) -> (bt, H, D), f32 accumulation.
    out = jnp.einsum("bhl,bld->bhd", attn.astype(cdt), xc,
                     preferred_element_type=f32)
    out_ref[...] = out.astype(out_ref.dtype)


def _round_up(x, m):
    return -(-x // m) * m


def _plan(B, L, D, O, H):
    """Pick the per-step batch tile bt, padded sizes, and the VMEM limit."""
    kind = ""
    try:
        kind = jax.devices()[0].device_kind.lower()
    except Exception:
        pass
    two_tc = "v7" in kind                          # v7x: 2 TensorCores, 64 MiB VMEM
    big_vmem = any(v in kind for v in ("v4", "v5", "v6"))   # 128 MiB physical VMEM
    vmem_limit = (64 if big_vmem else 48) * 1024 * 1024
    try:  # refine with the real capacity if the query is available
        cap_bytes = getattr(pltpu.get_tpu_info(), "vmem_capacity_bytes", None)
        if cap_bytes:
            vmem_limit = min(vmem_limit, int(cap_bytes) * 3 // 4)
    except Exception:
        pass
    budget = max(vmem_limit - 12 * 1024 * 1024, 8 * 1024 * 1024)

    Lp = _round_up(L, 8)
    Dp, Op, Hp = _round_up(D, 128), _round_up(O, 128), _round_up(H, 128)
    L128 = _round_up(Lp, 128)
    H8, D8, O8 = _round_up(H, 8), _round_up(D, 8), _round_up(O, 8)

    # Honest per-batch-element VMEM bytes: double-buffered pipeline blocks plus
    # every (lane/sublane-padded) in-kernel intermediate value.
    per_b = (
        2 * Lp * Dp * 4                 # x block (f32), double-buffered
        + 2 * 8 * L128 * 4              # mask block (1 -> 8 sublanes), double-buffered
        + 2 * H8 * Dp * 4               # f32 out block, double-buffered
        + Lp * Dp * (4 + 2)             # x value + bf16 copy
        + Lp * Op * (4 + 2)             # tanh(x @ w1t) f32 + bf16 copy
        + Lp * Hp * 4                   # logits in (N, H) layout (lane-padded)
        + (3 * 4 + 2) * H8 * L128       # transposed logits / exp / attn (+bf16)
        + H8 * Dp * 4                   # attended tile before store
    )
    fixed = 3 * (D8 * Op + O8 * Hp) * 4  # weight blocks (dbl-buffered) + cdt copies
    cap = max(1, (budget - fixed) // per_b)
    if two_tc and B >= 2:
        # Keep >= 2 grid steps so the parallel batch axis can be sharded across
        # both v7x TensorCores.  No such cap on single-TC v5e/v6e.
        cap = min(cap, _round_up(B, 2) // 2)
    cap = max(1, min(cap, B))

    # Prefer a divisor of B (no batch padding -> no extra HBM copy of x) when it
    # is at least half of the VMEM-derived cap; otherwise pad the batch.
    best_div = max(d for d in range(1, cap + 1) if B % d == 0)
    bt = best_div if best_div * 2 >= cap else cap
    B_pad = _round_up(B, bt)
    return bt, B_pad, Lp, vmem_limit


@functools.partial(jax.jit, static_argnames=("compute_dtype",))
def multi_head_self_attention(tsr, mask, w1, w2, compute_dtype=jnp.bfloat16):
    """tsr: (B, L, D), mask: (B, L) of {0,1}, w1: (O, D), w2: (H, O).
    Returns (B, H, D) float32, matching attended.permute(0, 2, 1)."""
    B, L, D = tsr.shape
    O = w1.shape[0]
    H = w2.shape[0]

    bt, B_pad, Lp, vmem_limit = _plan(B, L, D, O, H)

    # Raw mask reshaped to (B, 1, L) (free view); bias is built in-kernel.
    mask3 = mask.astype(jnp.float32).reshape(B, 1, L)

    x = tsr
    if Lp != L or B_pad != B:
        # Pad only when needed.  Padded sequence positions get mask=0 (excluded
        # from attention); padded batch rows get mask=1 so their (discarded)
        # softmax stays finite.
        x = jnp.pad(x, ((0, B_pad - B), (0, Lp - L), (0, 0)))
        mask3 = jnp.pad(mask3, ((0, B_pad - B), (0, 0), (0, Lp - L)),
                        constant_values=((0.0, 1.0), (0.0, 0.0), (0.0, 0.0)))

    # Tiny weight transposes so the kernel streams activations against
    # stationary weights with no in-kernel transpose of the big operand.
    w1t = w1.T   # (D, O)
    w2t = w2.T   # (O, H)

    out = pl.pallas_call(
        functools.partial(_mhsa_kernel, compute_dtype=compute_dtype),
        out_shape=jax.ShapeDtypeStruct((B_pad, H, D), jnp.float32),
        grid_spec=pltpu.PrefetchScalarGridSpec(
            num_scalar_prefetch=0,
            grid=(B_pad // bt,),
            in_specs=[
                pl.BlockSpec((bt, Lp, D), lambda i: (i, 0, 0)),
                pl.BlockSpec((bt, 1, Lp), lambda i: (i, 0, 0)),
                # Weights: constant block index -> fetched once, reused.
                pl.BlockSpec((D, O), lambda i: (0, 0)),
                pl.BlockSpec((O, H), lambda i: (0, 0)),
            ],
            out_specs=pl.BlockSpec((bt, H, D), lambda i: (i, 0, 0)),
        ),
        compiler_params=pltpu.CompilerParams(
            dimension_semantics=("parallel",),
            vmem_limit_bytes=vmem_limit,
        ),
    )(x, mask3, w1t, w2t)

    return out[:B] if B_pad != B else out


def reference_jax(tsr, mask, w1, w2):
    """Pure-JAX f32 reference mirroring the PyTorch forward."""
    tmp = jnp.tanh(jnp.einsum("bld,od->blo", tsr, w1))
    logits = jnp.einsum("blo,ho->blh", tmp, w2)
    doc_mask = (mask == 0)[:, :, None]                      # (B, L, 1)
    logits = jnp.where(doc_mask, -jnp.inf, logits)
    attn = jax.nn.softmax(logits, axis=1)                   # (B, L, H)
    attended = jnp.einsum("bdl,blh->bdh", jnp.transpose(tsr, (0, 2, 1)), attn)
    return jnp.transpose(attended, (0, 2, 1))               # (B, H, D)


if __name__ == "__main__":
    # Small shapes consistent with the module's forward.
    B, L = 2, 8
    inp_dim, out_dim, num_heads = 32, 16, 8

    key = jax.random.PRNGKey(0)
    k_t, k_m, k_w1, k_w2 = jax.random.split(key, 4)

    tsr = jax.random.normal(k_t, (B, L, inp_dim), dtype=jnp.float32)
    # 0/1 mask; ensure at least one valid token per row (module precondition,
    # avoids the all--inf -> NaN softmax case).
    mask = (jax.random.uniform(k_m, (B, L)) > 0.3).astype(jnp.float32)
    mask = mask.at[:, 0].set(1.0)

    # nn.Linear default init: U(-1/sqrt(fan_in), 1/sqrt(fan_in)), bias=False.
    bound1 = 1.0 / jnp.sqrt(jnp.float32(inp_dim))
    bound2 = 1.0 / jnp.sqrt(jnp.float32(out_dim))
    w1 = jax.random.uniform(k_w1, (out_dim, inp_dim), minval=-bound1,
                            maxval=bound1, dtype=jnp.float32)
    w2 = jax.random.uniform(k_w2, (num_heads, out_dim), minval=-bound2,
                            maxval=bound2, dtype=jnp.float32)

    ref = reference_jax(tsr, mask, w1, w2)

    # Exact-semantics path (f32 MXU operands, exact reciprocal): tight check.
    out_f32 = jax.block_until_ready(
        multi_head_self_attention(tsr, mask, w1, w2, compute_dtype=jnp.float32))
    assert out_f32.shape == (B, num_heads, inp_dim)
    assert jnp.allclose(out_f32, ref, atol=1e-4, rtol=1e-4), "f32 kernel mismatch"

    # Default fast path: bf16 MXU operands with f32 accumulation.
    out = jax.block_until_ready(multi_head_self_attention(tsr, mask, w1, w2))
    assert out.shape == (B, num_heads, inp_dim)
    assert jnp.allclose(out, ref, atol=5e-2, rtol=5e-2), "bf16 kernel mismatch"

    print("KERNEL_OK")
</pallas_src>

<mosaic_0001>
module attributes {stable_mosaic.version = 11 : i64} {
  func.func @_mhsa_kernel(%arg0: i32, %arg1: memref<2x8x32xf32, #tpu.memory_space<vmem>>, %arg2: memref<2x1x8xf32, #tpu.memory_space<vmem>>, %arg3: memref<32x16xf32, #tpu.memory_space<vmem>>, %arg4: memref<16x8xf32, #tpu.memory_space<vmem>>, %arg5: memref<2x8x32xf32, #tpu.memory_space<vmem>>) attributes {dimension_semantics = [#tpu.dimension_semantics<parallel>], iteration_bounds = array<i64: 1>, scalar_prefetch = 0 : i64, scratch_operands = 0 : i64, tpu.core_type = #tpu.core_type<tc>, window_params = [{transform_indices = @transform_0, window_bounds = array<i64: 2, 8, 32>}, {transform_indices = @transform_1, window_bounds = array<i64: 2, 1, 8>}, {pipeline_mode = #tpu.pipeline_mode<synchronous>, transform_indices = @transform_2, window_bounds = array<i64: 32, 16>}, {pipeline_mode = #tpu.pipeline_mode<synchronous>, transform_indices = @transform_3, window_bounds = array<i64: 16, 8>}, {transform_indices = @transform_4, window_bounds = array<i64: 2, 8, 32>}]} {
    %c0 = arith.constant 0 : index
    %c0_0 = arith.constant 0 : index
    %c0_1 = arith.constant 0 : index
    %0 = vector.load %arg1[%c0, %c0_0, %c0_1] : memref<2x8x32xf32, #tpu.memory_space<vmem>>, vector<2x8x32xf32>
    %c0_2 = arith.constant 0 : index
    %c0_3 = arith.constant 0 : index
    %1 = vector.load %arg3[%c0_2, %c0_3] : memref<32x16xf32, #tpu.memory_space<vmem>>, vector<32x16xf32>
    %c0_4 = arith.constant 0 : index
    %c0_5 = arith.constant 0 : index
    %2 = vector.load %arg4[%c0_4, %c0_5] : memref<16x8xf32, #tpu.memory_space<vmem>>, vector<16x8xf32>
    %3 = vector.shape_cast %0 : vector<2x8x32xf32> to vector<16x32xf32>
    %cst = arith.constant dense<0.000000e+00> : vector<16x16xf32>
    %4 = tpu.matmul %3, %1, %cst {dimension_numbers = #tpu.dot_dimension_numbers<[1], [0], [0], [1], [0, 0, 1, 1], [], []>} : vector<16x32xf32>, vector<32x16xf32>, vector<16x16xf32> -> vector<16x16xf32>
    %5 = math.tanh %4 : vector<16x16xf32>
    %cst_6 = arith.constant dense<0.000000e+00> : vector<16x8xf32>
    %6 = tpu.matmul %5, %2, %cst_6 {dimension_numbers = #tpu.dot_dimension_numbers<[1], [0], [0], [1], [0, 0, 1, 1], [], []>} : vector<16x16xf32>, vector<16x8xf32>, vector<16x8xf32> -> vector<16x8xf32>
    %7 = vector.shape_cast %6 : vector<16x8xf32> to vector<2x8x8xf32>
    %8 = tpu.transpose %7, [0, 2, 1] : vector<2x8x8xf32> -> vector<2x8x8xf32>
    %c0_7 = arith.constant 0 : index
    %c0_8 = arith.constant 0 : index
    %c0_9 = arith.constant 0 : index
    %9 = vector.load %arg2[%c0_7, %c0_8, %c0_9] : memref<2x1x8xf32, #tpu.memory_space<vmem>>, vector<2x1x8xf32>
    %cst_10 = arith.constant 0.000000e+00 : f32
    %10 = vector.broadcast %cst_10 : f32 to vector<2x1x8xf32>
    %11 = arith.cmpf oeq, %9, %10 : vector<2x1x8xf32>
    %cst_11 = arith.constant 0xFF800000 : f32
    %cst_12 = arith.constant 0.000000e+00 : f32
    %12 = vector.broadcast %cst_11 : f32 to vector<2x1x8xf32>
    %13 = vector.broadcast %cst_12 : f32 to vector<2x1x8xf32>
    %14 = arith.select %11, %12, %13 : vector<2x1x8xi1>, vector<2x1x8xf32>
    %15 = vector.broadcast %14 : vector<2x1x8xf32> to vector<2x8x8xf32>
    %16 = arith.addf %8, %15 : vector<2x8x8xf32>
    %cst_13 = arith.constant dense<0xFF800000> : vector<2x8xf32>
    %17 = vector.multi_reduction <maximumf>, %16, %cst_13 [2] : vector<2x8x8xf32> to vector<2x8xf32>
    %18 = vector.shape_cast %17 : vector<2x8xf32> to vector<2x8x1xf32>
    %19 = vector.broadcast %18 : vector<2x8x1xf32> to vector<2x8x8xf32>
    %20 = arith.subf %16, %19 : vector<2x8x8xf32>
    %21 = math.exp %20 : vector<2x8x8xf32>
    %cst_14 = arith.constant dense<0.000000e+00> : vector<2x8xf32>
    %22 = vector.multi_reduction <add>, %21, %cst_14 [2] : vector<2x8x8xf32> to vector<2x8xf32>
    %23 = vector.shape_cast %22 : vector<2x8xf32> to vector<2x8x1xf32>
    %24 = tpu.reciprocal %23 : vector<2x8x1xf32> -> vector<2x8x1xf32>
    %25 = vector.broadcast %24 : vector<2x8x1xf32> to vector<2x8x8xf32>
    %26 = arith.mulf %21, %25 : vector<2x8x8xf32>
    "tpu.trace_start"() <{level = 10 : i32, message = "bhl,bld->bhd"}> : () -> ()
    %cst_15 = arith.constant dense<0.000000e+00> : vector<2x8x32xf32>
    %27 = tpu.matmul %26, %0, %cst_15 {dimension_numbers = #tpu.dot_dimension_numbers<[2], [1], [1], [2], [0, 0, 0, 1, 1, 2], [0], [0]>} : vector<2x8x8xf32>, vector<2x8x32xf32>, vector<2x8x32xf32> -> vector<2x8x32xf32>
    "tpu.trace_stop"() : () -> ()
    %c0_16 = arith.constant 0 : index
    %c0_17 = arith.constant 0 : index
    %c0_18 = arith.constant 0 : index
    %28 = vector.load %arg5[%c0_16, %c0_17, %c0_18] : memref<2x8x32xf32, #tpu.memory_space<vmem>>, vector<2x8x32xf32>
    tpu.vector_store %arg5[%c0_16, %c0_17, %c0_18], %27 {strides = array<i32>} : memref<2x8x32xf32, #tpu.memory_space<vmem>>, vector<2x8x32xf32>,
    return
  }
  func.func @transform_0(%arg0: i32) -> (i32, i32, i32) {
    %c0_i32 = arith.constant 0 : i32
    %c0_i32_0 = arith.constant 0 : i32
    %c0_i32_1 = arith.constant 0 : i32
    return %arg0, %c0_i32, %c0_i32_0 : i32, i32, i32
  }
  func.func @transform_1(%arg0: i32) -> (i32, i32, i32) {
    %c0_i32 = arith.constant 0 : i32
    %c0_i32_0 = arith.constant 0 : i32
    %c0_i32_1 = arith.constant 0 : i32
    return %arg0, %c0_i32, %c0_i32_0 : i32, i32, i32
  }
  func.func @transform_2(%arg0: i32) -> (i32, i32) {
    %c0_i32 = arith.constant 0 : i32
    %c0_i32_0 = arith.constant 0 : i32
    %c0_i32_1 = arith.constant 0 : i32
    return %c0_i32, %c0_i32_0 : i32, i32
  }
  func.func @transform_3(%arg0: i32) -> (i32, i32) {
    %c0_i32 = arith.constant 0 : i32
    %c0_i32_0 = arith.constant 0 : i32
    %c0_i32_1 = arith.constant 0 : i32
    return %c0_i32, %c0_i32_0 : i32, i32
  }
  func.func @transform_4(%arg0: i32) -> (i32, i32, i32) {
    %c0_i32 = arith.constant 0 : i32
    %c0_i32_0 = arith.constant 0 : i32
    %c0_i32_1 = arith.constant 0 : i32
    return %arg0, %c0_i32, %c0_i32_0 : i32, i32, i32
  }
}

</mosaic_0001>

<llo_original>
// kernel: multi_head_self_attention.1
$region0: #{multi_head_self_attention.1}
  #allocation0 [shape = 'u32[]', space=smem, size = 0x4, offset = 0x4, fixed_abs, tag = 'smem constant byte address 0x4 - core index']
  #allocation1 [shape = 'u32[144,128]{1,0:T(1,128)}', space=vmem, size = 0x12000, scoped, tag = 'internal scratch']
  %s0 = inlined_call_operand.vmem [shape: f32[2,8,32], index: 0, kind: input, shape index: {}]
  %s1 = inlined_call_operand.vmem [shape: f32[2,1,8], index: 1, kind: input, shape index: {}]
  %s2 = inlined_call_operand.vmem [shape: f32[32,16], index: 2, kind: input, shape index: {}]
  %s3 = inlined_call_operand.vmem [shape: f32[16,8], index: 3, kind: input, shape index: {}]
  %s4 = inlined_call_operand.hbm [shape: f32[2,8,32], index: 4, kind: output, shape index: {}]
  %s5 = sld [smem:[#allocation0]]
  $region26: #{multi_head_self_attention.1} parent=0
    _
  %s7 = ssub.s32 1, %s5
  %s8 = scalar_select 0, %s7, %s5
  $region1: #{multi_head_self_attention.1} parent=0
    #allocation2 [shape = 'u8[8192]{0}', space=vmem, size = 0x2000, scoped, tag = 'output window, operand 0, single buffered']
    #allocation3 [shape = 's32[1]{0}', space=sflag, size = 0x4, scoped, tag = 'scoped memory for multi_head_self_attention.1']
    %9 = vsyncpa [#allocation3], 0
    // Predicated region
    $region2: #{multi_head_self_attention.1} parent=1 // pred_check
      _
    $region3: #{multi_head_self_attention.1} parent=1 // pred_check_branch
      %11 = sbr.rel (0) target = $region5
    $region4: #{multi_head_self_attention.1} parent=1 // pred_region
      _
    $region5: #{multi_head_self_attention.1} parent=1 // pred_fallthru
      _
    // Predicated region
    $region6: #{multi_head_self_attention.1} parent=1 // pred_check
      _
    $region7: #{multi_head_self_attention.1} parent=1 // pred_check_branch
      %13 = sbr.rel (0) target = $region9
    $region8: #{multi_head_self_attention.1} parent=1 // pred_region
      _
    $region9: #{multi_head_self_attention.1} parent=1 // pred_fallthru
      _
    // Predicated region
    $region10: #{multi_head_self_attention.1} parent=1 // pred_check
      _
    $region11: #{multi_head_self_attention.1} parent=1 // pred_check_branch
      %15 = sbr.rel (0) target = $region13
    $region12: #{multi_head_self_attention.1} parent=1 // pred_region
      _
    $region13: #{multi_head_self_attention.1} parent=1 // pred_fallthru
      _
    // Predicated region
    $region14: #{multi_head_self_attention.1} parent=1 // pred_check
      _
    $region15: #{multi_head_self_attention.1} parent=1 // pred_check_branch
      %17 = sbr.rel (0) target = $region17
    $region16: #{multi_head_self_attention.1} parent=1 // pred_region
      _
    $region17: #{multi_head_self_attention.1} parent=1 // pred_fallthru
      _
    %v18 = vld [vmem:[%s0] sm:$0xff]
    %v19 = vld [vmem:[%s0 + $0x8] sm:$0xff]
    %v20 = vld [vmem:[%s2] sm:$0xff]
    %v21 = vld [vmem:[%s2 + $0x8] sm:$0xff]
    %v22 = vld [vmem:[%s2 + $0x10] sm:$0xff]
    %v23 = vld [vmem:[%s2 + $0x18] sm:$0xff]
    %v24 = vld [vmem:[%s3] sm:$0xff]
    %v25 = vld [vmem:[%s3 + $0x8] sm:$0xff]
    %vm26 = vcmask 261120
    %v28 = vsel %vm26, %v18, 0
    %v31 = vsel %vm26, %v19, 0
    %33 = vmatprep.subr.mxu0 0.0
    %34 = vmatpush1.msra.mxu0 %v20
    %35 = vmatprep.subr.mxu0 0.0
    %36 = vmatpush1.msra.mxu0 %v21
    %37 = vmatprep.subr.mxu0 0.0
    %38 = vmatpush1.msra.mxu0 %v22
    %39 = vmatprep.subr.mxu0 0.0
    %40 = vmatpush1.msra.mxu0 %v23
    %41 = vmatprep.subr.mxu0 0.0
    %42 = vmatpush1.msra.mxu0 0.0
    %43 = vmatprep.subr.mxu0 0.0
    %44 = vmatpush1.msra.mxu0 0.0
    %45 = vmatprep.subr.mxu0 0.0
    %46 = vmatpush1.msra.mxu0 0.0
    %47 = vmatprep.subr.mxu0 0.0
    %48 = vmatpush1.msra.mxu0 0.0
    %49 = vmatprep.subr.mxu0 0.0
    %50 = vmatpush1.msra.mxu0 0.0
    %51 = vmatprep.subr.mxu0 0.0
    %52 = vmatpush1.msra.mxu0 0.0
    %53 = vmatprep.subr.mxu0 0.0
    %54 = vmatpush1.msra.mxu0 0.0
    %55 = vmatprep.subr.mxu0 0.0
    %56 = vmatpush1.msra.mxu0 0.0
    %57 = vmatprep.subr.mxu0 0.0
    %58 = vmatpush1.msra.mxu0 0.0
    %59 = vmatprep.subr.mxu0 0.0
    %60 = vmatpush1.msra.mxu0 0.0
    %61 = vmatprep.subr.mxu0 0.0
    %62 = vmatpush1.msra.mxu0 0.0
    %63 = vmatprep.subr.mxu0 0.0
    %64 = vmatpush1.msra.mxu0 0.0
    %65 = vmatprep.subr.mxu0 0.0
    %66 = vmatpush1.msra.mxu0 0.0
    %67 = vmatprep.subr.mxu0 0.0
    %68 = vmatpush1.msra.mxu0 0.0
    %69 = vmatprep.subr.mxu0 0.0
    %70 = vmatpush1.msra.mxu0 0.0
    %71 = vmatprep.subr.mxu0 0.0
    %72 = vmatpush1.msra.mxu0 0.0
    %73 = vmatprep.subr.mxu0 0.0
    %74 = vmatpush1.msra.mxu0 0.0
    %75 = vmatprep.subr.mxu0 0.0
    %76 = vmatpush1.msra.mxu0 0.0
    %77 = vmatprep.subr.mxu0 0.0
    %78 = vmatpush1.msra.mxu0 0.0
    %79 = vmatprep.subr.mxu0 0.0
    %80 = vmatpush1.msra.mxu0 0.0
    %81 = vmatprep.subr.mxu0 0.0
    %82 = vmatpush1.msra.mxu0 0.0
    %83 = vmatprep.subr.mxu0 0.0
    %84 = vmatpush1.msra.mxu0 0.0
    %85 = vmatprep.subr.mxu0 0.0
    %86 = vmatpush1.msra.mxu0 0.0
    %87 = vmatprep.subr.mxu0 0.0
    %88 = vmatpush1.msra.mxu0 0.0
    %89 = vmatprep.subr.mxu0 0.0
    %90 = vmatpush1.msra.mxu0 0.0
    %91 = vmatprep.subr.mxu0 0.0
    %92 = vmatpush1.msra.mxu0 0.0
    %93 = vmatprep.subr.mxu0 0.0
    %94 = vmatpush1.msra.mxu0 0.0
    %95 = vmatprep.subr.mxu0 0.0
    %96 = vmatpush1.msra.mxu0 0.0
    %97 = vmatprep.mubr.f32.mxu0 0.0
    %98 = vmatmul.mubr.f32.gmra.mrb[0].mxu0 %v28
    %v99 = vpop.f32.mrb[0].mxu0
    %v100 = vadd.f32 0.0, %v99
    %v101 = vpop.f32.mrb[0].mxu0
    %102 = vmatprep.mubr.f32.mxu0 0.0
    %103 = vmatmul.mubr.f32.gmra.mrb[0].mxu0 %v31
    %v104 = vpop.f32.mrb[0].mxu0
    %v105 = vadd.f32 0.0, %v104
    %v106 = vpop.f32.mrb[0].mxu0
    %107 = vdwg.mxu0
    %v108 = vtanh.pop %v100
    %v109 = vtanh.pop %v105
    %vm110 = vcmask 130048
    %v112 = vsel %vm110, %v108, 0
    %v115 = vsel %vm110, %v109, 0
    %117 = vmatprep.subr.mxu0 0.0
    %118 = vmatpush1.msra.mxu0 %v24
    %119 = vmatprep.subr.mxu0 0.0
    %120 = vmatpush1.msra.mxu0 %v25
    %121 = vmatprep.subr.mxu0 0.0
    %122 = vmatpush1.msra.mxu0 0.0
    %123 = vmatprep.subr.mxu0 0.0
    %124 = vmatpush1.msra.mxu0 0.0
    %125 = vmatprep.subr.mxu0 0.0
    %126 = vmatpush1.msra.mxu0 0.0
    %127 = vmatprep.subr.mxu0 0.0
    %128 = vmatpush1.msra.mxu0 0.0
    %129 = vmatprep.subr.mxu0 0.0
    %130 = vmatpush1.msra.mxu0 0.0
    %131 = vmatprep.subr.mxu0 0.0
    %132 = vmatpush1.msra.mxu0 0.0
    %133 = vmatprep.subr.mxu0 0.0
    %134 = vmatpush1.msra.mxu0 0.0
    %135 = vmatprep.subr.mxu0 0.0
    %136 = vmatpush1.msra.mxu0 0.0
    %137 = vmatprep.subr.mxu0 0.0
    %138 = vmatpush1.msra.mxu0 0.0
    %139 = vmatprep.subr.mxu0 0.0
    %140 = vmatpush1.msra.mxu0 0.0
    %141 = vmatprep.subr.mxu0 0.0
    %142 = vmatpush1.msra.mxu0 0.0
    %143 = vmatprep.subr.mxu0 0.0
    %144 = vmatpush1.msra.mxu0 0.0
    %145 = vmatprep.subr.mxu0 0.0
    %146 = vmatpush1.msra.mxu0 0.0
    %147 = vmatprep.subr.mxu0 0.0
    %148 = vmatpush1.msra.mxu0 0.0
    %149 = vmatprep.subr.mxu0 0.0
    %150 = vmatpush1.msra.mxu0 0.0
    %151 = vmatprep.subr.mxu0 0.0
    %152 = vmatpush1.msra.mxu0 0.0
    %153 = vmatprep.subr.mxu0 0.0
    %154 = vmatpush1.msra.mxu0 0.0
    %155 = vmatprep.subr.mxu0 0.0
    %156 = vmatpush1.msra.mxu0 0.0
    %157 = vmatprep.subr.mxu0 0.0
    %158 = vmatpush1.msra.mxu0 0.0
    %159 = vmatprep.subr.mxu0 0.0
    %160 = vmatpush1.msra.mxu0 0.0
    %161 = vmatprep.subr.mxu0 0.0
    %162 = vmatpush1.msra.mxu0 0.0
    %163 = vmatprep.subr.mxu0 0.0
    %164 = vmatpush1.msra.mxu0 0.0
    %165 = vmatprep.subr.mxu0 0.0
    %166 = vmatpush1.msra.mxu0 0.0
    %167 = vmatprep.subr.mxu0 0.0
    %168 = vmatpush1.msra.mxu0 0.0
    %169 = vmatprep.subr.mxu0 0.0
    %170 = vmatpush1.msra.mxu0 0.0
    %171 = vmatprep.subr.mxu0 0.0
    %172 = vmatpush1.msra.mxu0 0.0
    %173 = vmatprep.subr.mxu0 0.0
    %174 = vmatpush1.msra.mxu0 0.0
    %175 = vmatprep.subr.mxu0 0.0
    %176 = vmatpush1.msra.mxu0 0.0
    %177 = vmatprep.subr.mxu0 0.0
    %178 = vmatpush1.msra.mxu0 0.0
    %179 = vmatprep.subr.mxu0 0.0
    %180 = vmatpush1.msra.mxu0 0.0
    %181 = vmatprep.mubr.f32.mxu0 0.0
    %182 = vmatmul.mubr.f32.gmra.mrb[0].mxu0 %v112
    %v183 = vpop.f32.mrb[0].mxu0
    %v184 = vadd.f32 0.0, %v183
    %v185 = vpop.f32.mrb[0].mxu0
    %186 = vmatprep.mubr.f32.mxu0 0.0
    %187 = vmatmul.mubr.f32.gmra.mrb[0].mxu0 %v115
    %v188 = vpop.f32.mrb[0].mxu0
    %v189 = vadd.f32 0.0, %v188
    %v190 = vpop.f32.mrb[0].mxu0
    %191 = vdwg.mxu0
    %192 = vxpose.xlu0.b32.start [1/16] %v184, 128
    %193 = vxpose.xlu0.b32.cont [2/16] 0.0, 128
    %194 = vxpose.xlu0.b32.cont [3/16] 0.0, 128
    %195 = vxpose.xlu0.b32.cont [4/16] 0.0, 128
    %196 = vxpose.xlu0.b32.cont [5/16] 0.0, 128
    %197 = vxpose.xlu0.b32.cont [6/16] 0.0, 128
    %198 = vxpose.xlu0.b32.cont [7/16] 0.0, 128
    %199 = vxpose.xlu0.b32.cont [8/16] 0.0, 128
    %200 = vxpose.xlu0.b32.cont [9/16] 0.0, 128
    %201 = vxpose.xlu0.b32.cont [10/16] 0.0, 128
    %202 = vxpose.xlu0.b32.cont [11/16] 0.0, 128
    %203 = vxpose.xlu0.b32.cont [12/16] 0.0, 128
    %204 = vxpose.xlu0.b32.cont [13/16] 0.0, 128
    %205 = vxpose.xlu0.b32.cont [14/16] 0.0, 128
    %206 = vxpose.xlu0.b32.cont [15/16] 0.0, 128
    %207 = vxpose.xlu0.b32.end [16/16] 0.0, 128
    %v208 = vpop.trf.xlu0
    %v209 = vpop.trf.xlu0
    %v210 = vpop.trf.xlu0
    %v211 = vpop.trf.xlu0
    %v212 = vpop.trf.xlu0
    %v213 = vpop.trf.xlu0
    %v214 = vpop.trf.xlu0
    %v215 = vpop.trf.xlu0
    %v216 = vpop.trf.xlu0
    %v217 = vpop.trf.xlu0
    %v218 = vpop.trf.xlu0
    %v219 = vpop.trf.xlu0
    %v220 = vpop.trf.xlu0
    %v221 = vpop.trf.xlu0
    %v222 = vpop.trf.xlu0
    %v223 = vpop.trf.xlu0
    %224 = vxpose.xlu0.b32.start [1/16] %v189, 128
    %225 = vxpose.xlu0.b32.cont [2/16] 0.0, 128
    %226 = vxpose.xlu0.b32.cont [3/16] 0.0, 128
    %227 = vxpose.xlu0.b32.cont [4/16] 0.0, 128
    %228 = vxpose.xlu0.b32.cont [5/16] 0.0, 128
    %229 = vxpose.xlu0.b32.cont [6/16] 0.0, 128
    %230 = vxpose.xlu0.b32.cont [7/16] 0.0, 128
    %231 = vxpose.xlu0.b32.cont [8/16] 0.0, 128
    %232 = vxpose.xlu0.b32.cont [9/16] 0.0, 128
    %233 = vxpose.xlu0.b32.cont [10/16] 0.0, 128
    %234 = vxpose.xlu0.b32.cont [11/16] 0.0, 128
    %235 = vxpose.xlu0.b32.cont [12/16] 0.0, 128
    %236 = vxpose.xlu0.b32.cont [13/16] 0.0, 128
    %237 = vxpose.xlu0.b32.cont [14/16] 0.0, 128
    %238 = vxpose.xlu0.b32.cont [15/16] 0.0, 128
    %239 = vxpose.xlu0.b32.end [16/16] 0.0, 128
    %v240 = vpop.trf.xlu0
    %v241 = vpop.trf.xlu0
    %v242 = vpop.trf.xlu0
    %v243 = vpop.trf.xlu0
    %v244 = vpop.trf.xlu0
    %v245 = vpop.trf.xlu0
    %v246 = vpop.trf.xlu0
    %v247 = vpop.trf.xlu0
    %v248 = vpop.trf.xlu0
    %v249 = vpop.trf.xlu0
    %v250 = vpop.trf.xlu0
    %v251 = vpop.trf.xlu0
    %v252 = vpop.trf.xlu0
    %v253 = vpop.trf.xlu0
    %v254 = vpop.trf.xlu0
    %v255 = vpop.trf.xlu0
    %v256 = vld [vmem:[%s1] sm:$0x1]
    %v257 = vld [vmem:[%s1 + $0x1] sm:$0x1]
    %vm258 = vcmp.eq.f32.partialorder %v256, 0.0
    %vm259 = vcmp.eq.f32.partialorder %v257, 0.0
    %v260 = vsel %vm258, -inf, 0.0
    %v261 = vsel %vm259, -inf, 0.0
    %v264 = vlaneseq
    %v265 = vshrl.u32 %v264, 7
    %v266 = vsub.s32 0, %v265
    %v267 = vrot.slane %v260, %v266
    %v268 = vlaneseq
    %v269 = vshrl.u32 %v268, 7
    %v270 = vsub.s32 0, %v269
    %v271 = vrot.slane %v261, %v270
    %v274 = vadd.f32 %v208, %v267
    %v275 = vadd.f32 %v240, %v271
    %vm276 = vcmask 64512
    %v277 = vsel %vm276, %v274, -inf
    %278 = vmax.xlane.f32.xlu0 %v277
    %v279 = vpop.xlane.xlu0 %278
    %v280 = vsel %vm276, %v275, -inf
    %281 = vmax.xlane.f32.xlu0 %v280
    %v282 = vpop.xlane.xlu0 %281
    %v283 = vsub.f32 %v274, %v279
    %v284 = vsub.f32 %v275, %v282
    %v285 = vmul.f32 %v283, 1.442695
    %v286 = vpow.pop %v285
    %v287 = vmul.f32 %v284, 1.442695
    %v288 = vpow.pop %v287
    %v289 = vsel %vm276, %v286, 0.0
    %290 = vadd.xlane.f32.xlu0 %v289
    %v291 = vpop.xlane.xlu0 %290
    %v292 = vsel %vm276, %v288, 0.0
    %293 = vadd.xlane.f32.xlu0 %v292
    %v294 = vpop.xlane.xlu0 %293
    %v295 = vrcp.pop %v291
    %v296 = vrcp.pop %v294
    %v297 = vmul.f32 %v286, %v295
    %v298 = vmul.f32 %v288, %v296
    %v300 = vsel %vm276, %v297, 0
    %302 = vmatprep.subr.mxu0 0.0
    %303 = vmatpush1.msra.mxu0 %v18
    %304 = vmatprep.subr.mxu0 0.0
    %305 = vmatpush1.msra.mxu0 0.0
    %306 = vmatprep.subr.mxu0 0.0
    %307 = vmatpush1.msra.mxu0 0.0
    %308 = vmatprep.subr.mxu0 0.0
    %309 = vmatpush1.msra.mxu0 0.0
    %310 = vmatprep.subr.mxu0 0.0
    %311 = vmatpush1.msra.mxu0 0.0
    %312 = vmatprep.subr.mxu0 0.0
    %313 = vmatpush1.msra.mxu0 0.0
    %314 = vmatprep.subr.mxu0 0.0
    %315 = vmatpush1.msra.mxu0 0.0
    %316 = vmatprep.subr.mxu0 0.0
    %317 = vmatpush1.msra.mxu0 0.0
    %318 = vmatprep.subr.mxu0 0.0
    %319 = vmatpush1.msra.mxu0 0.0
    %320 = vmatprep.subr.mxu0 0.0
    %321 = vmatpush1.msra.mxu0 0.0
    %322 = vmatprep.subr.mxu0 0.0
    %323 = vmatpush1.msra.mxu0 0.0
    %324 = vmatprep.subr.mxu0 0.0
    %325 = vmatpush1.msra.mxu0 0.0
    %326 = vmatprep.subr.mxu0 0.0
    %327 = vmatpush1.msra.mxu0 0.0
    %328 = vmatprep.subr.mxu0 0.0
    %329 = vmatpush1.msra.mxu0 0.0
    %330 = vmatprep.subr.mxu0 0.0
    %331 = vmatpush1.msra.mxu0 0.0
    %332 = vmatprep.subr.mxu0 0.0
    %333 = vmatpush1.msra.mxu0 0.0
    %334 = vmatprep.subr.mxu0 0.0
    %335 = vmatpush1.msra.mxu0 0.0
    %336 = vmatprep.subr.mxu0 0.0
    %337 = vmatpush1.msra.mxu0 0.0
    %338 = vmatprep.subr.mxu0 0.0
    %339 = vmatpush1.msra.mxu0 0.0
    %340 = vmatprep.subr.mxu0 0.0
    %341 = vmatpush1.msra.mxu0 0.0
    %342 = vmatprep.subr.mxu0 0.0
    %343 = vmatpush1.msra.mxu0 0.0
    %344 = vmatprep.subr.mxu0 0.0
    %345 = vmatpush1.msra.mxu0 0.0
    %346 = vmatprep.subr.mxu0 0.0
    %347 = vmatpush1.msra.mxu0 0.0
    %348 = vmatprep.subr.mxu0 0.0
    %349 = vmatpush1.msra.mxu0 0.0
    %350 = vmatprep.subr.mxu0 0.0
    %351 = vmatpush1.msra.mxu0 0.0
    %352 = vmatprep.subr.mxu0 0.0
    %353 = vmatpush1.msra.mxu0 0.0
    %354 = vmatprep.subr.mxu0 0.0
    %355 = vmatpush1.msra.mxu0 0.0
    %356 = vmatprep.subr.mxu0 0.0
    %357 = vmatpush1.msra.mxu0 0.0
    %358 = vmatprep.subr.mxu0 0.0
    %359 = vmatpush1.msra.mxu0 0.0
    %360 = vmatprep.subr.mxu0 0.0
    %361 = vmatpush1.msra.mxu0 0.0
    %362 = vmatprep.subr.mxu0 0.0
    %363 = vmatpush1.msra.mxu0 0.0
    %364 = vmatprep.subr.mxu0 0.0
    %365 = vmatpush1.msra.mxu0 0.0
    %366 = vmatprep.mubr.f32.mxu0 0.0
    %367 = vmatmul.mubr.f32.gmra.mrb[0].mxu0 %v300
    %v368 = vpop.f32.mrb[0].mxu0
    %v369 = vadd.f32 0.0, %v368
    %v370 = vpop.f32.mrb[0].mxu0
    %371 = vdwg.mxu0
    %v373 = vsel %vm276, %v298, 0
    %375 = vmatprep.subr.mxu0 0.0
    %376 = vmatpush1.msra.mxu0 %v19
    %377 = vmatprep.subr.mxu0 0.0
    %378 = vmatpush1.msra.mxu0 0.0
    %379 = vmatprep.subr.mxu0 0.0
    %380 = vmatpush1.msra.mxu0 0.0
    %381 = vmatprep.subr.mxu0 0.0
    %382 = vmatpush1.msra.mxu0 0.0
    %383 = vmatprep.subr.mxu0 0.0
    %384 = vmatpush1.msra.mxu0 0.0
    %385 = vmatprep.subr.mxu0 0.0
    %386 = vmatpush1.msra.mxu0 0.0
    %387 = vmatprep.subr.mxu0 0.0
    %388 = vmatpush1.msra.mxu0 0.0
    %389 = vmatprep.subr.mxu0 0.0
    %390 = vmatpush1.msra.mxu0 0.0
    %391 = vmatprep.subr.mxu0 0.0
    %392 = vmatpush1.msra.mxu0 0.0
    %393 = vmatprep.subr.mxu0 0.0
    %394 = vmatpush1.msra.mxu0 0.0
    %395 = vmatprep.subr.mxu0 0.0
    %396 = vmatpush1.msra.mxu0 0.0
    %397 = vmatprep.subr.mxu0 0.0
    %398 = vmatpush1.msra.mxu0 0.0
    %399 = vmatprep.subr.mxu0 0.0
    %400 = vmatpush1.msra.mxu0 0.0
    %401 = vmatprep.subr.mxu0 0.0
    %402 = vmatpush1.msra.mxu0 0.0
    %403 = vmatprep.subr.mxu0 0.0
    %404 = vmatpush1.msra.mxu0 0.0
    %405 = vmatprep.subr.mxu0 0.0
    %406 = vmatpush1.msra.mxu0 0.0
    %407 = vmatprep.subr.mxu0 0.0
    %408 = vmatpush1.msra.mxu0 0.0
    %409 = vmatprep.subr.mxu0 0.0
    %410 = vmatpush1.msra.mxu0 0.0
    %411 = vmatprep.subr.mxu0 0.0
    %412 = vmatpush1.msra.mxu0 0.0
    %413 = vmatprep.subr.mxu0 0.0
    %414 = vmatpush1.msra.mxu0 0.0
    %415 = vmatprep.subr.mxu0 0.0
    %416 = vmatpush1.msra.mxu0 0.0
    %417 = vmatprep.subr.mxu0 0.0
    %418 = vmatpush1.msra.mxu0 0.0
    %419 = vmatprep.subr.mxu0 0.0
    %420 = vmatpush1.msra.mxu0 0.0
    %421 = vmatprep.subr.mxu0 0.0
    %422 = vmatpush1.msra.mxu0 0.0
    %423 = vmatprep.subr.mxu0 0.0
    %424 = vmatpush1.msra.mxu0 0.0
    %425 = vmatprep.subr.mxu0 0.0
    %426 = vmatpush1.msra.mxu0 0.0
    %427 = vmatprep.subr.mxu0 0.0
    %428 = vmatpush1.msra.mxu0 0.0
    %429 = vmatprep.subr.mxu0 0.0
    %430 = vmatpush1.msra.mxu0 0.0
    %431 = vmatprep.subr.mxu0 0.0
    %432 = vmatpush1.msra.mxu0 0.0
    %433 = vmatprep.subr.mxu0 0.0
    %434 = vmatpush1.msra.mxu0 0.0
    %435 = vmatprep.subr.mxu0 0.0
    %436 = vmatpush1.msra.mxu0 0.0
    %437 = vmatprep.subr.mxu0 0.0
    %438 = vmatpush1.msra.mxu0 0.0
    %439 = vmatprep.mubr.f32.mxu0 0.0
    %440 = vmatmul.mubr.f32.gmra.mrb[0].mxu0 %v373
    %v441 = vpop.f32.mrb[0].mxu0
    %v442 = vadd.f32 0.0, %v441
    %v443 = vpop.f32.mrb[0].mxu0
    %444 = vdwg.mxu0
    %445 = vst.msk [vmem:[#allocation2] sm:$0xff] %vm26, %v369
    %446 = vst.msk [vmem:[#allocation2 + $0x8] sm:$0xff] %vm26, %v442
    // Predicated region
    $region18: #{multi_head_self_attention.1} parent=1 // pred_check
      _
    $region19: #{multi_head_self_attention.1} parent=1 // pred_check_branch
      %448 = sbr.rel (0) target = $region21
    $region20: #{multi_head_self_attention.1} parent=1 // pred_region
      %s450 = ssub.s32 256, 256
      %451 = vsyncadd [#allocation3], %s450
      %s452 = sshll.u32 [#allocation2], 4
      %s453 = int_to_ptr.vmem [resolvable:$true] %s452
      %458 = dma.vmem_to_hbm [thread:$0]  %s453, 256, %s4, [#allocation3], 128, 128, 8
    $region21: #{multi_head_self_attention.1} parent=1 // pred_fallthru
      _
    // Predicated region
    $region22: #{multi_head_self_attention.1} parent=1 // pred_check
      _
    $region23: #{multi_head_self_attention.1} parent=1 // pred_check_branch
      %460 = sbr.rel (0) target = $region25
    $region24: #{multi_head_self_attention.1} parent=1 // pred_region
      %461 = dma.done [#allocation3], 256
    $region25: #{multi_head_self_attention.1} parent=1 // pred_fallthru
      _
    %462 = vsyncpa [#allocation3], 1

</llo_original>
